<compile_context>
chip_gen: v7x
topology: tpu7x:2x2x1
jax: 0.10.0
libtpu: 0.0.40
codegen_flags: <defaults>
</compile_context>

<pallas_src>
import functools

import jax
import jax.numpy as jnp
from jax.experimental import pallas as pl
from jax.experimental.pallas import tpu as pltpu


def _round_up(x, m):
    return ((x + m - 1) // m) * m


def _pick_batch_tile(batch, seq_len, emb_dim, itemsize, k_taps, f_pad,
                     budget_bytes=12 * 1024 * 1024):
    """Largest batch tile whose per-step VMEM footprint fits the budget."""
    per_sample = seq_len * (
        2 * emb_dim * itemsize        # x tile, double buffered
        + 4 * k_taps * f_pad          # conv matmul output (f32)
        + 8 * f_pad                   # shift-combine / ReLU temporaries (f32)
    )
    tb = budget_bytes // max(per_sample, 1)
    tb = max(8, min(256, (tb // 8) * 8))
    return min(tb, _round_up(batch, 8))


def textcnn_kernel(kernel_size, lout,
                   x_ref, wc_ref, bc_ref, w1_ref, b1_ref, w2_ref, b2_ref,
                   invt_ref, out_ref):
    """One batch tile of the post-embedding forward pass.

    x_ref:    (TB, L, E)      bf16  embedded tokens
    wc_ref:   (E, K*Fp)       bf16  conv weight, taps stacked along lanes
    bc_ref:   (1, Fp)         f32
    w1_ref:   (Fp, Hp)        f32   fc1 weight (zero padded)
    b1_ref:   (1, Hp)         f32
    w2_ref:   (Hp, 2)         f32   fc2 weight (zero padded rows)
    b2_ref:   (1, 2)          f32
    invt_ref: (1,)            f32   SMEM scalar, 1/temperature
    out_ref:  (TB, 2)         f32
    """
    tb, seq_len, emb_dim = x_ref.shape
    f_pad = bc_ref.shape[-1]
    k_taps = kernel_size

    # --- Conv1d as ONE MXU matmul over all K taps -------------------------
    x2d = x_ref[...].reshape(tb * seq_len, emb_dim)                 # bf16
    y = jnp.dot(x2d, wc_ref[...], preferred_element_type=jnp.float32)
    y = y.reshape(tb, seq_len, k_taps * f_pad)                      # f32

    # Combine the K time-shifted, lane-aligned (multiples of 128) slices.
    conv = y[:, 0:lout, 0:f_pad]
    for k in range(1, k_taps):                                      # static
        conv = conv + y[:, k:k + lout, k * f_pad:(k + 1) * f_pad]

    bias = bc_ref[...].reshape(1, 1, f_pad)
    conv = jnp.maximum(conv + bias, 0.0)                            # ReLU

    # --- global max pool over time (torch.max(..., dim=2)[0]) -------------
    pooled = jnp.max(conv, axis=1)                                  # (TB, Fp)

    # --- fc1 + ReLU --------------------------------------------------------
    h = jnp.dot(pooled, w1_ref[...], preferred_element_type=jnp.float32)
    h = jnp.maximum(h + b1_ref[...], 0.0)

    # TODO(synk): Dropout(0.5) is identity in eval/inference; training-mode
    # Bernoulli masking (pltpu.prng_seed / prng_random_bits) not implemented.

    # --- fc2 / temperature --------------------------------------------------
    logits = jnp.dot(h, w2_ref[...], preferred_element_type=jnp.float32)
    logits = logits + b2_ref[...]
    out_ref[...] = (logits * invt_ref[0]).astype(out_ref.dtype)


def textcnn_forward(tokens, params, temperature=1.0):
    if float(temperature) == 0.0:
        raise ValueError("temperature must be non-zero")

    # Embedding lookup stays in plain JAX (gather); table is bf16 so the
    # (B, L, E) round trip through HBM is half-width.
    # TODO(synk): fuse the gather into the kernel (scalar-prefetch tokens +
    # per-row DMA from an HBM-resident table) to remove the HBM round trip.
    emb = params["embedding"][tokens]                    # (B, L, E) bf16
    B, L, E = emb.shape
    K, _, F = params["wconv"].shape
    H = params["w1"].shape[1]
    Lout = L - K + 1

    Fp = _round_up(F, 128)                               # lane-dense filters
    Hp = _round_up(H, 128)                               # lane-dense fc1 width

    # --- flatten / zero-pad weights (done once, outside the kernel) -------
    wflat = jnp.pad(params["wconv"], ((0, 0), (0, 0), (0, Fp - F)))  # (K,E,Fp)
    wflat = jnp.transpose(wflat, (1, 0, 2)).reshape(E, K * Fp)       # bf16
    bconv = jnp.pad(params["bconv"], ((0, 0), (0, Fp - F))).astype(jnp.float32)
    w1 = jnp.pad(params["w1"], ((0, Fp - F), (0, Hp - H))).astype(jnp.float32)
    b1 = jnp.pad(params["b1"], ((0, 0), (0, Hp - H))).astype(jnp.float32)
    w2 = jnp.pad(params["w2"], ((0, Hp - H), (0, 0))).astype(jnp.float32)
    b2 = params["b2"].astype(jnp.float32)

    # --- batch tiling -------------------------------------------------------
    tb = _pick_batch_tile(B, L, E, emb.dtype.itemsize, K, Fp)
    B_pad = _round_up(B, tb)
    if B_pad != B:
        emb = jnp.pad(emb, ((0, B_pad - B), (0, 0), (0, 0)))
    nb = B_pad // tb

    inv_t = jnp.asarray([1.0 / float(temperature)], jnp.float32)
    kernel = functools.partial(textcnn_kernel, K, Lout)

    grid_spec = pltpu.PrefetchScalarGridSpec(
        num_scalar_prefetch=0,
        grid=(nb,),
        in_specs=[
            pl.BlockSpec((tb, L, E), lambda b: (b, 0, 0)),      # x: tiled
            pl.BlockSpec((E, K * Fp), lambda b: (0, 0)),        # weights stay
            pl.BlockSpec((1, Fp), lambda b: (0, 0)),            # resident in
            pl.BlockSpec((Fp, Hp), lambda b: (0, 0)),           # VMEM across
            pl.BlockSpec((1, Hp), lambda b: (0, 0)),            # grid steps
            pl.BlockSpec((Hp, 2), lambda b: (0, 0)),
            pl.BlockSpec((1, 2), lambda b: (0, 0)),
            pl.BlockSpec(memory_space=pltpu.MemorySpace.SMEM),  # 1/temperature
        ],
        out_specs=pl.BlockSpec((tb, 2), lambda b: (b, 0)),
    )

    out = pl.pallas_call(
        kernel,
        out_shape=jax.ShapeDtypeStruct((B_pad, 2), jnp.float32),
        grid_spec=grid_spec,
        compiler_params=pltpu.CompilerParams(
            dimension_semantics=("parallel",),       # 2 TCs on v7x
            vmem_limit_bytes=48 * 1024 * 1024,       # safe on 64/128 MiB VMEM
        ),
    )(emb, wflat, bconv, w1, b1, w2, b2, inv_t)
    return out[:B]


def init_params(key, vocab_size, embedding_dim, num_filters, kernel_size):
    ks = jax.random.split(key, 7)
    scale = 0.1
    return {
        # nn.Embedding(vocab_size + 1, embedding_dim) -- stored bf16
        "embedding": jax.random.normal(
            ks[0], (vocab_size + 1, embedding_dim), jnp.float32
        ).astype(jnp.bfloat16),
        # nn.Conv1d(E, F, K) weight is (F, E, K) in torch; stored (K, E, F) bf16
        "wconv": (scale * jax.random.normal(
            ks[1], (kernel_size, embedding_dim, num_filters), jnp.float32)
        ).astype(jnp.bfloat16),
        "bconv": scale * jax.random.normal(ks[2], (1, num_filters), jnp.float32),
        # nn.Linear(F, 32): torch weight (32, F) -> stored transposed (F, 32)
        "w1": scale * jax.random.normal(ks[3], (num_filters, 32), jnp.float32),
        "b1": scale * jax.random.normal(ks[4], (1, 32), jnp.float32),
        # nn.Linear(32, 2): torch weight (2, 32) -> stored transposed (32, 2)
        "w2": scale * jax.random.normal(ks[5], (32, 2), jnp.float32),
        "b2": scale * jax.random.normal(ks[6], (1, 2), jnp.float32),
    }


def reference_forward(tokens, params, temperature=1.0):
    """Pure-JAX (f32) reference mirroring the PyTorch forward (eval mode)."""
    emb = params["embedding"][tokens].astype(jnp.float32)   # (B, L, E)
    wconv = params["wconv"].astype(jnp.float32)             # (K, E, F)
    K = wconv.shape[0]
    L = emb.shape[1]
    Lout = L - K + 1
    conv = sum(
        jnp.einsum("ble,ef->blf", emb[:, k:k + Lout, :], wconv[k],
                   precision="highest")
        for k in range(K)
    ) + params["bconv"]                                      # (B, Lout, F)
    conv = jnp.maximum(conv, 0.0)
    pooled = conv.max(axis=1)                                # (B, F)
    h = jnp.maximum(
        jnp.dot(pooled, params["w1"], precision="highest") + params["b1"], 0.0)
    return (jnp.dot(h, params["w2"], precision="highest")
            + params["b2"]) / temperature


if __name__ == "__main__":
    vocab_size = 50
    embedding_dim = 32
    num_filters = 16
    kernel_size = 3
    max_sequence_length = 16
    batch = 2
    temperature = 2.0

    key = jax.random.PRNGKey(0)
    k_params, k_tokens = jax.random.split(key)
    params = init_params(k_params, vocab_size, embedding_dim,
                         num_filters, kernel_size)
    tokens = jax.random.randint(
        k_tokens, (batch, max_sequence_length), 0, vocab_size + 1,
        dtype=jnp.int32)

    out = textcnn_forward(tokens, params, temperature)
    out = jax.block_until_ready(out)

    ref = reference_forward(tokens, params, temperature)
    assert out.shape == (batch, 2), out.shape
    assert jnp.allclose(out, ref, atol=2e-2, rtol=2e-2), (out, ref)

    print("KERNEL_OK")
</pallas_src>

<mosaic_0001>
module attributes {stable_mosaic.version = 11 : i64} {
  func.func @textcnn_kernel(%arg0: i32, %arg1: memref<8x16x32xbf16, #tpu.memory_space<vmem>>, %arg2: memref<32x384xbf16, #tpu.memory_space<vmem>>, %arg3: memref<1x128xf32, #tpu.memory_space<vmem>>, %arg4: memref<128x128xf32, #tpu.memory_space<vmem>>, %arg5: memref<1x128xf32, #tpu.memory_space<vmem>>, %arg6: memref<128x2xf32, #tpu.memory_space<vmem>>, %arg7: memref<1x2xf32, #tpu.memory_space<vmem>>, %arg8: memref<1xf32, #tpu.memory_space<smem>>, %arg9: memref<8x2xf32, #tpu.memory_space<vmem>>) attributes {dimension_semantics = [#tpu.dimension_semantics<parallel>], iteration_bounds = array<i64: 1>, scalar_prefetch = 0 : i64, scratch_operands = 0 : i64, tpu.core_type = #tpu.core_type<tc>, window_params = [{transform_indices = @transform_0, window_bounds = array<i64: 8, 16, 32>}, {pipeline_mode = #tpu.pipeline_mode<synchronous>, transform_indices = @transform_1, window_bounds = array<i64: 32, 384>}, {pipeline_mode = #tpu.pipeline_mode<synchronous>, transform_indices = @transform_2, window_bounds = array<i64: 1, 128>}, {pipeline_mode = #tpu.pipeline_mode<synchronous>, transform_indices = @transform_3, window_bounds = array<i64: 128, 128>}, {pipeline_mode = #tpu.pipeline_mode<synchronous>, transform_indices = @transform_4, window_bounds = array<i64: 1, 128>}, {pipeline_mode = #tpu.pipeline_mode<synchronous>, transform_indices = @transform_5, window_bounds = array<i64: 128, 2>}, {pipeline_mode = #tpu.pipeline_mode<synchronous>, transform_indices = @transform_6, window_bounds = array<i64: 1, 2>}, {transform_indices = @transform_7, window_bounds = array<i64: 1>}, {transform_indices = @transform_8, window_bounds = array<i64: 8, 2>}]} {
    %c0 = arith.constant 0 : index
    %c0_0 = arith.constant 0 : index
    %c0_1 = arith.constant 0 : index
    %0 = vector.load %arg1[%c0, %c0_0, %c0_1] : memref<8x16x32xbf16, #tpu.memory_space<vmem>>, vector<8x16x32xbf16>
    %1 = vector.shape_cast %0 : vector<8x16x32xbf16> to vector<128x32xbf16>
    %c0_2 = arith.constant 0 : index
    %c0_3 = arith.constant 0 : index
    %2 = vector.load %arg2[%c0_2, %c0_3] : memref<32x384xbf16, #tpu.memory_space<vmem>>, vector<32x384xbf16>
    %cst = arith.constant dense<0.000000e+00> : vector<128x384xf32>
    %3 = tpu.matmul %1, %2, %cst {dimension_numbers = #tpu.dot_dimension_numbers<[1], [0], [0], [1], [0, 0, 1, 1], [], []>} : vector<128x32xbf16>, vector<32x384xbf16>, vector<128x384xf32> -> vector<128x384xf32>
    %4 = vector.shape_cast %3 : vector<128x384xf32> to vector<8x16x384xf32>
    %5 = vector.extract_strided_slice %4 {offsets = [0, 0, 0], sizes = [8, 14, 128], strides = [1, 1, 1]} : vector<8x16x384xf32> to vector<8x14x128xf32>
    %6 = vector.extract_strided_slice %4 {offsets = [0, 1, 128], sizes = [8, 14, 128], strides = [1, 1, 1]} : vector<8x16x384xf32> to vector<8x14x128xf32>
    %7 = arith.addf %5, %6 : vector<8x14x128xf32>
    %8 = vector.extract_strided_slice %4 {offsets = [0, 2, 256], sizes = [8, 14, 128], strides = [1, 1, 1]} : vector<8x16x384xf32> to vector<8x14x128xf32>
    %9 = arith.addf %7, %8 : vector<8x14x128xf32>
    %c0_4 = arith.constant 0 : index
    %c0_5 = arith.constant 0 : index
    %10 = vector.load %arg3[%c0_4, %c0_5] : memref<1x128xf32, #tpu.memory_space<vmem>>, vector<1x128xf32>
    %11 = vector.shape_cast %10 : vector<1x128xf32> to vector<1x1x128xf32>
    %12 = vector.broadcast %11 : vector<1x1x128xf32> to vector<8x14x128xf32>
    %13 = arith.addf %9, %12 : vector<8x14x128xf32>
    %cst_6 = arith.constant 0.000000e+00 : f32
    %14 = vector.broadcast %cst_6 : f32 to vector<8x14x128xf32>
    %15 = arith.maximumf %13, %14 : vector<8x14x128xf32>
    %cst_7 = arith.constant dense<0xFF800000> : vector<8x128xf32>
    %16 = vector.multi_reduction <maximumf>, %15, %cst_7 [1] : vector<8x14x128xf32> to vector<8x128xf32>
    %c0_8 = arith.constant 0 : index
    %c0_9 = arith.constant 0 : index
    %17 = vector.load %arg4[%c0_8, %c0_9] : memref<128x128xf32, #tpu.memory_space<vmem>>, vector<128x128xf32>
    %cst_10 = arith.constant dense<0.000000e+00> : vector<8x128xf32>
    %18 = tpu.matmul %16, %17, %cst_10 {dimension_numbers = #tpu.dot_dimension_numbers<[1], [0], [0], [1], [0, 0, 1, 1], [], []>} : vector<8x128xf32>, vector<128x128xf32>, vector<8x128xf32> -> vector<8x128xf32>
    %c0_11 = arith.constant 0 : index
    %c0_12 = arith.constant 0 : index
    %19 = vector.load %arg5[%c0_11, %c0_12] : memref<1x128xf32, #tpu.memory_space<vmem>>, vector<1x128xf32>
    %20 = vector.broadcast %19 : vector<1x128xf32> to vector<8x128xf32>
    %21 = arith.addf %18, %20 : vector<8x128xf32>
    %cst_13 = arith.constant 0.000000e+00 : f32
    %22 = vector.broadcast %cst_13 : f32 to vector<8x128xf32>
    %23 = arith.maximumf %21, %22 : vector<8x128xf32>
    %c0_14 = arith.constant 0 : index
    %c0_15 = arith.constant 0 : index
    %24 = vector.load %arg6[%c0_14, %c0_15] : memref<128x2xf32, #tpu.memory_space<vmem>>, vector<128x2xf32>
    %cst_16 = arith.constant dense<0.000000e+00> : vector<8x2xf32>
    %25 = tpu.matmul %23, %24, %cst_16 {dimension_numbers = #tpu.dot_dimension_numbers<[1], [0], [0], [1], [0, 0, 1, 1], [], []>} : vector<8x128xf32>, vector<128x2xf32>, vector<8x2xf32> -> vector<8x2xf32>
    %c0_17 = arith.constant 0 : index
    %c0_18 = arith.constant 0 : index
    %26 = vector.load %arg7[%c0_17, %c0_18] : memref<1x2xf32, #tpu.memory_space<vmem>>, vector<1x2xf32>
    %27 = vector.broadcast %26 : vector<1x2xf32> to vector<8x2xf32>
    %28 = arith.addf %25, %27 : vector<8x2xf32>
    %c0_19 = arith.constant 0 : index
    %29 = memref.load %arg8[%c0_19] : memref<1xf32, #tpu.memory_space<smem>>
    %30 = vector.broadcast %29 : f32 to vector<8x2xf32>
    %31 = arith.mulf %28, %30 : vector<8x2xf32>
    %c0_20 = arith.constant 0 : index
    %c0_21 = arith.constant 0 : index
    %32 = vector.load %arg9[%c0_20, %c0_21] : memref<8x2xf32, #tpu.memory_space<vmem>>, vector<8x2xf32>
    tpu.vector_store %arg9[%c0_20, %c0_21], %31 {strides = array<i32>} : memref<8x2xf32, #tpu.memory_space<vmem>>, vector<8x2xf32>,
    return
  }
  func.func @transform_0(%arg0: i32) -> (i32, i32, i32) {
    %c0_i32 = arith.constant 0 : i32
    %c0_i32_0 = arith.constant 0 : i32
    %c0_i32_1 = arith.constant 0 : i32
    return %arg0, %c0_i32, %c0_i32_0 : i32, i32, i32
  }
  func.func @transform_1(%arg0: i32) -> (i32, i32) {
    %c0_i32 = arith.constant 0 : i32
    %c0_i32_0 = arith.constant 0 : i32
    %c0_i32_1 = arith.constant 0 : i32
    return %c0_i32, %c0_i32_0 : i32, i32
  }
  func.func @transform_2(%arg0: i32) -> (i32, i32) {
    %c0_i32 = arith.constant 0 : i32
    %c0_i32_0 = arith.constant 0 : i32
    %c0_i32_1 = arith.constant 0 : i32
    return %c0_i32, %c0_i32_0 : i32, i32
  }
  func.func @transform_3(%arg0: i32) -> (i32, i32) {
    %c0_i32 = arith.constant 0 : i32
    %c0_i32_0 = arith.constant 0 : i32
    %c0_i32_1 = arith.constant 0 : i32
    return %c0_i32, %c0_i32_0 : i32, i32
  }
  func.func @transform_4(%arg0: i32) -> (i32, i32) {
    %c0_i32 = arith.constant 0 : i32
    %c0_i32_0 = arith.constant 0 : i32
    %c0_i32_1 = arith.constant 0 : i32
    return %c0_i32, %c0_i32_0 : i32, i32
  }
  func.func @transform_5(%arg0: i32) -> (i32, i32) {
    %c0_i32 = arith.constant 0 : i32
    %c0_i32_0 = arith.constant 0 : i32
    %c0_i32_1 = arith.constant 0 : i32
    return %c0_i32, %c0_i32_0 : i32, i32
  }
  func.func @transform_6(%arg0: i32) -> (i32, i32) {
    %c0_i32 = arith.constant 0 : i32
    %c0_i32_0 = arith.constant 0 : i32
    %c0_i32_1 = arith.constant 0 : i32
    return %c0_i32, %c0_i32_0 : i32, i32
  }
  func.func @transform_7(%arg0: i32) -> i32 {
    %c0_i32 = arith.constant 0 : i32
    %c0_i32_0 = arith.constant 0 : i32
    return %c0_i32 : i32
  }
  func.func @transform_8(%arg0: i32) -> (i32, i32) {
    %c0_i32 = arith.constant 0 : i32
    %c0_i32_0 = arith.constant 0 : i32
    return %arg0, %c0_i32 : i32, i32
  }
}

</mosaic_0001>

<llo_original>
// kernel: tpu_custom_call.1
$region0: #{tpu_custom_call.1}
  #allocation0 [shape = 'u32[]', space=smem, size = 0x4, offset = 0x4, fixed_abs, tag = 'smem constant byte address 0x4 - core index']
  #allocation1 [shape = 'u32[144,128]{1,0:T(1,128)}', space=vmem, size = 0x12000, scoped, tag = 'internal scratch']
  #allocation2 [shape = 'f32[1]{0:T(128)S(6)}', space=smem, size = 0x200, scoped, tag = 'scoped memory for tpu_custom_call.1']
  %s0 = inlined_call_operand.hbm [shape: bf16[8,16,32], index: 0, kind: input, shape index: {}]
  %s1 = inlined_call_operand.hbm [shape: bf16[32,384], index: 1, kind: input, shape index: {}]
  %s2 = inlined_call_operand.vmem [shape: f32[1,128], index: 2, kind: input, shape index: {}]
  %s3 = inlined_call_operand.vmem [shape: f32[128,128], index: 3, kind: input, shape index: {}]
  %s4 = inlined_call_operand.vmem [shape: f32[1,128], index: 4, kind: input, shape index: {}]
  %s5 = inlined_call_operand.vmem [shape: f32[128,2], index: 5, kind: input, shape index: {}]
  %s6 = inlined_call_operand.vmem [shape: f32[1,2], index: 6, kind: input, shape index: {}]
  %s7 = inlined_call_operand.<no memory space> [shape: f32[1], index: 7, kind: input, shape index: {}]
  %s8 = inlined_call_operand.vmem [shape: f32[8,2], index: 8, kind: output, shape index: {}]
  %s9 = sld [smem:[#allocation0]]
  $region50: #{tpu_custom_call.1} parent=0
    _
  %s11 = ssub.s32 1, %s9
  %s12 = scalar_select 0, %s11, %s9
  %13 = sst [smem:[#allocation2]] %s7
  $region1: #{tpu_custom_call.1} parent=0
    #allocation3 [shape = 'u8[32768]{0}', space=vmem, size = 0x8000, scoped, tag = 'input window, operand 0, single buffered']
    #allocation4 [shape = 's32[1]{0}', space=sflag, size = 0x4, scoped, tag = 'scoped memory for tpu_custom_call.1']
    #allocation5 [shape = 'u8[24576]{0}', space=vmem, size = 0x6000, scoped, tag = 'input window, operand 1, single buffered']
    #allocation6 [shape = 's32[1]{0}', space=sflag, size = 0x4, scoped, tag = 'scoped memory for tpu_custom_call.1']
    %14 = vsyncpa [#allocation4], 0
    %15 = vsyncpa [#allocation6], 0
    // Predicated region
    $region2: #{tpu_custom_call.1} parent=1 // pred_check
      _
    $region3: #{tpu_custom_call.1} parent=1 // pred_check_branch
      %17 = sbr.rel (0) target = $region5
    $region4: #{tpu_custom_call.1} parent=1 // pred_region
      %s19 = ssub.s32 1024, 1024
      %20 = vsyncadd [#allocation4], %s19
      %s21 = sshll.u32 [#allocation3], 4
      %s22 = int_to_ptr.vmem [resolvable:$true] %s21
      %27 = dma.hbm_to_vmem [thread:$0]  %s0, 1024, %s22, [#allocation4], 64, 64, 4
    $region5: #{tpu_custom_call.1} parent=1 // pred_fallthru
      _
    // Predicated region
    $region6: #{tpu_custom_call.1} parent=1 // pred_check
      _
    $region7: #{tpu_custom_call.1} parent=1 // pred_check_branch
      %29 = sbr.rel (0) target = $region9
    $region8: #{tpu_custom_call.1} parent=1 // pred_region
      %s31 = ssub.s32 768, 768
      %32 = vsyncadd [#allocation6], %s31
      %s33 = sshll.u32 [#allocation5], 4
      %s34 = int_to_ptr.vmem [resolvable:$true] %s33
      %39 = dma.hbm_to_vmem [thread:$0]  %s1, 768, %s34, [#allocation6], 192, 192, 12
    $region9: #{tpu_custom_call.1} parent=1 // pred_fallthru
      _
    // Predicated region
    $region10: #{tpu_custom_call.1} parent=1 // pred_check
      _
    $region11: #{tpu_custom_call.1} parent=1 // pred_check_branch
      %41 = sbr.rel (0) target = $region13
    $region12: #{tpu_custom_call.1} parent=1 // pred_region
      _
    $region13: #{tpu_custom_call.1} parent=1 // pred_fallthru
      _
    // Predicated region
    $region14: #{tpu_custom_call.1} parent=1 // pred_check
      _
    $region15: #{tpu_custom_call.1} parent=1 // pred_check_branch
      %43 = sbr.rel (0) target = $region17
    $region16: #{tpu_custom_call.1} parent=1 // pred_region
      _
    $region17: #{tpu_custom_call.1} parent=1 // pred_fallthru
      _
    // Predicated region
    $region18: #{tpu_custom_call.1} parent=1 // pred_check
      _
    $region19: #{tpu_custom_call.1} parent=1 // pred_check_branch
      %45 = sbr.rel (0) target = $region21
    $region20: #{tpu_custom_call.1} parent=1 // pred_region
      _
    $region21: #{tpu_custom_call.1} parent=1 // pred_fallthru
      _
    // Predicated region
    $region22: #{tpu_custom_call.1} parent=1 // pred_check
      _
    $region23: #{tpu_custom_call.1} parent=1 // pred_check_branch
      %47 = sbr.rel (0) target = $region25
    $region24: #{tpu_custom_call.1} parent=1 // pred_region
      _
    $region25: #{tpu_custom_call.1} parent=1 // pred_fallthru
      _
    // Predicated region
    $region26: #{tpu_custom_call.1} parent=1 // pred_check
      _
    $region27: #{tpu_custom_call.1} parent=1 // pred_check_branch
      %49 = sbr.rel (0) target = $region29
    $region28: #{tpu_custom_call.1} parent=1 // pred_region
      _
    $region29: #{tpu_custom_call.1} parent=1 // pred_fallthru
      _
    // Predicated region
    $region30: #{tpu_custom_call.1} parent=1 // pred_check
      _
    $region31: #{tpu_custom_call.1} parent=1 // pred_check_branch
      %51 = sbr.rel (0) target = $region33
    $region32: #{tpu_custom_call.1} parent=1 // pred_region
      _
    $region33: #{tpu_custom_call.1} parent=1 // pred_fallthru
      _
    // Predicated region
    $region34: #{tpu_custom_call.1} parent=1 // pred_check
      _
    $region35: #{tpu_custom_call.1} parent=1 // pred_check_branch
      %53 = sbr.rel (0) target = $region37
    $region36: #{tpu_custom_call.1} parent=1 // pred_region
      %54 = dma.done [#allocation4], 1024
    $region37: #{tpu_custom_call.1} parent=1 // pred_fallthru
      _
    // Predicated region
    $region38: #{tpu_custom_call.1} parent=1 // pred_check
      _
    $region39: #{tpu_custom_call.1} parent=1 // pred_check_branch
      %56 = sbr.rel (0) target = $region41
    $region40: #{tpu_custom_call.1} parent=1 // pred_region
      %57 = dma.done [#allocation6], 768
    $region41: #{tpu_custom_call.1} parent=1 // pred_fallthru
      _
    %v59 = vld [vmem:[#allocation3] sm:$0xf]
    %v60 = vld [vmem:[#allocation3 + $0x4] sm:$0xf]
    %v61 = vld [vmem:[#allocation3 + $0x8] sm:$0xf]
    %v62 = vld [vmem:[#allocation3 + $0xc] sm:$0xf]
    %v63 = vld [vmem:[#allocation3 + $0x10] sm:$0xf]
    %v64 = vld [vmem:[#allocation3 + $0x14] sm:$0xf]
    %v65 = vld [vmem:[#allocation3 + $0x18] sm:$0xf]
    %v66 = vld [vmem:[#allocation3 + $0x1c] sm:$0xf]
    %v67 = vld [vmem:[#allocation3 + $0x20] sm:$0xf]
    %v68 = vld [vmem:[#allocation3 + $0x24] sm:$0xf]
    %v69 = vld [vmem:[#allocation3 + $0x28] sm:$0xf]
    %v70 = vld [vmem:[#allocation3 + $0x2c] sm:$0xf]
    %v71 = vld [vmem:[#allocation3 + $0x30] sm:$0xf]
    %v72 = vld [vmem:[#allocation3 + $0x34] sm:$0xf]
    %v73 = vld [vmem:[#allocation3 + $0x38] sm:$0xf]
    %v74 = vld [vmem:[#allocation3 + $0x3c] sm:$0xf]
    %v75 = vld [vmem:[#allocation5] sm:$0xff]
    %v76 = vld [vmem:[#allocation5 + $0x8] sm:$0xf]
    %v77 = vld [vmem:[#allocation5 + $0xc] sm:$0xff]
    %v78 = vld [vmem:[#allocation5 + $0x14] sm:$0xf]
    %v79 = vld [vmem:[#allocation5 + $0x18] sm:$0xff]
    %v80 = vld [vmem:[#allocation5 + $0x20] sm:$0xf]
    %v81 = vld [vmem:[#allocation5 + $0x24] sm:$0xff]
    %v82 = vld [vmem:[#allocation5 + $0x2c] sm:$0xf]
    %v99 = vunpack.c.l.b16 %v59
    %v100 = vunpack.c.l.b16 %v60
    %v101 = vunpack.c.l.b16 %v61
    %v102 = vunpack.c.l.b16 %v62
    %v103 = vunpack.c.l.b16 %v63
    %v104 = vunpack.c.l.b16 %v64
    %v105 = vunpack.c.l.b16 %v65
    %v106 = vunpack.c.l.b16 %v66
    %v107 = vunpack.c.l.b16 %v67
    %v108 = vunpack.c.l.b16 %v68
    %v109 = vunpack.c.l.b16 %v69
    %v110 = vunpack.c.l.b16 %v70
    %v111 = vunpack.c.l.b16 %v71
    %v112 = vunpack.c.l.b16 %v72
    %v113 = vunpack.c.l.b16 %v73
    %v114 = vunpack.c.l.b16 %v74
    %v115 = vpack.c.b16 %v100, %v99
    %v116 = vpack.c.b16 %v102, %v101
    %v117 = vpack.c.b16 %v104, %v103
    %v118 = vpack.c.b16 %v106, %v105
    %v119 = vpack.c.b16 %v108, %v107
    %v120 = vpack.c.b16 %v110, %v109
    %v121 = vpack.c.b16 %v112, %v111
    %v122 = vpack.c.b16 %v114, %v113
    %v131 = vunpack.c.l.b16 %v75
    %v132 = vunpack.c.h.b16 %v75
    %v133 = vunpack.c.l.b16 %v76
    %v134 = vunpack.c.l.b16 %v77
    %v135 = vunpack.c.h.b16 %v77
    %v136 = vunpack.c.l.b16 %v78
    %v137 = vunpack.c.l.b16 %v79
    %v138 = vunpack.c.h.b16 %v79
    %v139 = vunpack.c.l.b16 %v80
    %v140 = vunpack.c.l.b16 %v81
    %v141 = vunpack.c.h.b16 %v81
    %v142 = vunpack.c.l.b16 %v82
    %v143 = vpack.c.b16 %v134, %v131
    %v144 = vpack.c.b16 %v135, %v132
    %v145 = vpack.c.b16 %v136, %v133
    %v146 = vpack.c.b16 %v140, %v137
    %v147 = vpack.c.b16 %v141, %v138
    %v148 = vpack.c.b16 %v142, %v139
    %vm155 = vcmask 261120
    %v157 = vsel %vm155, %v115, 0
    %v160 = vsel %vm155, %v116, 0
    %v163 = vsel %vm155, %v117, 0
    %v166 = vsel %vm155, %v118, 0
    %v169 = vsel %vm155, %v119, 0
    %v172 = vsel %vm155, %v120, 0
    %v175 = vsel %vm155, %v121, 0
    %v178 = vsel %vm155, %v122, 0
    %180 = vmatprep.subr.bf16.mxu0 %v144
    %181 = vmatpush1.bf16.msra.mxu0 %v143
    %182 = vmatprep.subr.bf16.mxu0 %v147
    %183 = vmatpush1.bf16.msra.mxu0 %v146
    %184 = vmatprep.subr.bf16.mxu0 0
    %185 = vmatpush1.bf16.msra.mxu0 0
    %186 = vmatprep.subr.bf16.mxu0 0
    %187 = vmatpush1.bf16.msra.mxu0 0
    %188 = vmatprep.subr.bf16.mxu0 0
    %189 = vmatpush1.bf16.msra.mxu0 0
    %190 = vmatprep.subr.bf16.mxu0 0
    %191 = vmatpush1.bf16.msra.mxu0 0
    %192 = vmatprep.subr.bf16.mxu0 0
    %193 = vmatpush1.bf16.msra.mxu0 0
    %194 = vmatprep.subr.bf16.mxu0 0
    %195 = vmatpush1.bf16.msra.mxu0 0
    %196 = vmatprep.subr.bf16.mxu0 0
    %197 = vmatpush1.bf16.msra.mxu0 0
    %198 = vmatprep.subr.bf16.mxu0 0
    %199 = vmatpush1.bf16.msra.mxu0 0
    %200 = vmatprep.subr.bf16.mxu0 0
    %201 = vmatpush1.bf16.msra.mxu0 0
    %202 = vmatprep.subr.bf16.mxu0 0
    %203 = vmatpush1.bf16.msra.mxu0 0
    %204 = vmatprep.subr.bf16.mxu0 0
    %205 = vmatpush1.bf16.msra.mxu0 0
    %206 = vmatprep.subr.bf16.mxu0 0
    %207 = vmatpush1.bf16.msra.mxu0 0
    %208 = vmatprep.subr.bf16.mxu0 0
    %209 = vmatpush1.bf16.msra.mxu0 0
    %210 = vmatprep.subr.bf16.mxu0 0
    %211 = vmatpush1.bf16.msra.mxu0 0
    %212 = vmatprep.mubr.bf16.mxu0 0
    %213 = vmatmul.mubr.bf16.gmra.mrb[0].mxu0 %v157
    %v214 = vpop.f32.mrb[0].mxu0
    %v215 = vadd.f32 0.0, %v214
    %v216 = vpop.f32.mrb[0].mxu0
    %v217 = vadd.f32 0.0, %v216
    %v218 = vpop.f32.mrb[0].mxu0
    %v219 = vadd.f32 0.0, %v218
    %v220 = vpop.f32.mrb[0].mxu0
    %v221 = vadd.f32 0.0, %v220
    %222 = vmatprep.mubr.bf16.mxu0 0
    %223 = vmatmul.mubr.bf16.gmra.mrb[0].mxu0 %v160
    %v224 = vpop.f32.mrb[0].mxu0
    %v225 = vadd.f32 0.0, %v224
    %v226 = vpop.f32.mrb[0].mxu0
    %v227 = vadd.f32 0.0, %v226
    %v228 = vpop.f32.mrb[0].mxu0
    %v229 = vadd.f32 0.0, %v228
    %v230 = vpop.f32.mrb[0].mxu0
    %v231 = vadd.f32 0.0, %v230
    %232 = vmatprep.mubr.bf16.mxu0 0
    %233 = vmatmul.mubr.bf16.gmra.mrb[0].mxu0 %v163
    %v234 = vpop.f32.mrb[0].mxu0
    %v235 = vadd.f32 0.0, %v234
    %v236 = vpop.f32.mrb[0].mxu0
    %v237 = vadd.f32 0.0, %v236
    %v238 = vpop.f32.mrb[0].mxu0
    %v239 = vadd.f32 0.0, %v238
    %v240 = vpop.f32.mrb[0].mxu0
    %v241 = vadd.f32 0.0, %v240
    %242 = vmatprep.mubr.bf16.mxu0 0
    %243 = vmatmul.mubr.bf16.gmra.mrb[0].mxu0 %v166
    %v244 = vpop.f32.mrb[0].mxu0
    %v245 = vadd.f32 0.0, %v244
    %v246 = vpop.f32.mrb[0].mxu0
    %v247 = vadd.f32 0.0, %v246
    %v248 = vpop.f32.mrb[0].mxu0
    %v249 = vadd.f32 0.0, %v248
    %v250 = vpop.f32.mrb[0].mxu0
    %v251 = vadd.f32 0.0, %v250
    %252 = vmatprep.mubr.bf16.mxu0 0
    %253 = vmatmul.mubr.bf16.gmra.mrb[0].mxu0 %v169
    %v254 = vpop.f32.mrb[0].mxu0
    %v255 = vadd.f32 0.0, %v254
    %v256 = vpop.f32.mrb[0].mxu0
    %v257 = vadd.f32 0.0, %v256
    %v258 = vpop.f32.mrb[0].mxu0
    %v259 = vadd.f32 0.0, %v258
    %v260 = vpop.f32.mrb[0].mxu0
    %v261 = vadd.f32 0.0, %v260
    %262 = vmatprep.mubr.bf16.mxu0 0
    %263 = vmatmul.mubr.bf16.gmra.mrb[0].mxu0 %v172
    %v264 = vpop.f32.mrb[0].mxu0
    %v265 = vadd.f32 0.0, %v264
    %v266 = vpop.f32.mrb[0].mxu0
    %v267 = vadd.f32 0.0, %v266
    %v268 = vpop.f32.mrb[0].mxu0
    %v269 = vadd.f32 0.0, %v268
    %v270 = vpop.f32.mrb[0].mxu0
    %v271 = vadd.f32 0.0, %v270
    %272 = vmatprep.mubr.bf16.mxu0 0
    %273 = vmatmul.mubr.bf16.gmra.mrb[0].mxu0 %v175
    %v274 = vpop.f32.mrb[0].mxu0
    %v275 = vadd.f32 0.0, %v274
    %v276 = vpop.f32.mrb[0].mxu0
    %v277 = vadd.f32 0.0, %v276
    %v278 = vpop.f32.mrb[0].mxu0
    %v279 = vadd.f32 0.0, %v278
    %v280 = vpop.f32.mrb[0].mxu0
    %v281 = vadd.f32 0.0, %v280
    %282 = vmatprep.mubr.bf16.mxu0 0
    %283 = vmatmul.mubr.bf16.gmra.mrb[0].mxu0 %v178
    %v284 = vpop.f32.mrb[0].mxu0
    %v285 = vadd.f32 0.0, %v284
    %v286 = vpop.f32.mrb[0].mxu0
    %v287 = vadd.f32 0.0, %v286
    %v288 = vpop.f32.mrb[0].mxu0
    %v289 = vadd.f32 0.0, %v288
    %v290 = vpop.f32.mrb[0].mxu0
    %v291 = vadd.f32 0.0, %v290
    %292 = vdwg.mxu0
    %293 = vmatprep.subr.bf16.mxu0 0
    %294 = vmatpush1.bf16.msra.mxu0 %v145
    %295 = vmatprep.subr.bf16.mxu0 0
    %296 = vmatpush1.bf16.msra.mxu0 %v148
    %297 = vmatprep.subr.bf16.mxu0 0
    %298 = vmatpush1.bf16.msra.mxu0 0
    %299 = vmatprep.subr.bf16.mxu0 0
    %300 = vmatpush1.bf16.msra.mxu0 0
    %301 = vmatprep.subr.bf16.mxu0 0
    %302 = vmatpush1.bf16.msra.mxu0 0
    %303 = vmatprep.subr.bf16.mxu0 0
    %304 = vmatpush1.bf16.msra.mxu0 0
    %305 = vmatprep.subr.bf16.mxu0 0
    %306 = vmatpush1.bf16.msra.mxu0 0
    %307 = vmatprep.subr.bf16.mxu0 0
    %308 = vmatpush1.bf16.msra.mxu0 0
    %309 = vmatprep.subr.bf16.mxu0 0
    %310 = vmatpush1.bf16.msra.mxu0 0
    %311 = vmatprep.subr.bf16.mxu0 0
    %312 = vmatpush1.bf16.msra.mxu0 0
    %313 = vmatprep.subr.bf16.mxu0 0
    %314 = vmatpush1.bf16.msra.mxu0 0
    %315 = vmatprep.subr.bf16.mxu0 0
    %316 = vmatpush1.bf16.msra.mxu0 0
    %317 = vmatprep.subr.bf16.mxu0 0
    %318 = vmatpush1.bf16.msra.mxu0 0
    %319 = vmatprep.subr.bf16.mxu0 0
    %320 = vmatpush1.bf16.msra.mxu0 0
    %321 = vmatprep.subr.bf16.mxu0 0
    %322 = vmatpush1.bf16.msra.mxu0 0
    %323 = vmatprep.subr.bf16.mxu0 0
    %324 = vmatpush1.bf16.msra.mxu0 0
    %325 = vmatprep.mubr.bf16.mxu0 0
    %326 = vmatmul.mubr.bf16.gmra.mrb[0].mxu0 %v157
    %v327 = vpop.f32.mrb[0].mxu0
    %v328 = vadd.f32 0.0, %v327
    %v329 = vpop.f32.mrb[0].mxu0
    %v330 = vpop.f32.mrb[0].mxu0
    %v331 = vadd.f32 0.0, %v330
    %v332 = vpop.f32.mrb[0].mxu0
    %333 = vmatprep.mubr.bf16.mxu0 0
    %334 = vmatmul.mubr.bf16.gmra.mrb[0].mxu0 %v160
    %v335 = vpop.f32.mrb[0].mxu0
    %v336 = vadd.f32 0.0, %v335
    %v337 = vpop.f32.mrb[0].mxu0
    %v338 = vpop.f32.mrb[0].mxu0
    %v339 = vadd.f32 0.0, %v338
    %v340 = vpop.f32.mrb[0].mxu0
    %341 = vmatprep.mubr.bf16.mxu0 0
    %342 = vmatmul.mubr.bf16.gmra.mrb[0].mxu0 %v163
    %v343 = vpop.f32.mrb[0].mxu0
    %v344 = vadd.f32 0.0, %v343
    %v345 = vpop.f32.mrb[0].mxu0
    %v346 = vpop.f32.mrb[0].mxu0
    %v347 = vadd.f32 0.0, %v346
    %v348 = vpop.f32.mrb[0].mxu0
    %349 = vmatprep.mubr.bf16.mxu0 0
    %350 = vmatmul.mubr.bf16.gmra.mrb[0].mxu0 %v166
    %v351 = vpop.f32.mrb[0].mxu0
    %v352 = vadd.f32 0.0, %v351
    %v353 = vpop.f32.mrb[0].mxu0
    %v354 = vpop.f32.mrb[0].mxu0
    %v355 = vadd.f32 0.0, %v354
    %v356 = vpop.f32.mrb[0].mxu0
    %357 = vmatprep.mubr.bf16.mxu0 0
    %358 = vmatmul.mubr.bf16.gmra.mrb[0].mxu0 %v169
    %v359 = vpop.f32.mrb[0].mxu0
    %v360 = vadd.f32 0.0, %v359
    %v361 = vpop.f32.mrb[0].mxu0
    %v362 = vpop.f32.mrb[0].mxu0
    %v363 = vadd.f32 0.0, %v362
    %v364 = vpop.f32.mrb[0].mxu0
    %365 = vmatprep.mubr.bf16.mxu0 0
    %366 = vmatmul.mubr.bf16.gmra.mrb[0].mxu0 %v172
    %v367 = vpop.f32.mrb[0].mxu0
    %v368 = vadd.f32 0.0, %v367
    %v369 = vpop.f32.mrb[0].mxu0
    %v370 = vpop.f32.mrb[0].mxu0
    %v371 = vadd.f32 0.0, %v370
    %v372 = vpop.f32.mrb[0].mxu0
    %373 = vmatprep.mubr.bf16.mxu0 0
    %374 = vmatmul.mubr.bf16.gmra.mrb[0].mxu0 %v175
    %v375 = vpop.f32.mrb[0].mxu0
    %v376 = vadd.f32 0.0, %v375
    %v377 = vpop.f32.mrb[0].mxu0
    %v378 = vpop.f32.mrb[0].mxu0
    %v379 = vadd.f32 0.0, %v378
    %v380 = vpop.f32.mrb[0].mxu0
    %381 = vmatprep.mubr.bf16.mxu0 0
    %382 = vmatmul.mubr.bf16.gmra.mrb[0].mxu0 %v178
    %v383 = vpop.f32.mrb[0].mxu0
    %v384 = vadd.f32 0.0, %v383
    %v385 = vpop.f32.mrb[0].mxu0
    %v386 = vpop.f32.mrb[0].mxu0
    %v387 = vadd.f32 0.0, %v386
    %v388 = vpop.f32.mrb[0].mxu0
    %389 = vdwg.mxu0
    %vm406 = vcmask 1046528
    %v407 = vrot.slane %v217, 1
    %v408 = vrot.slane %v221, 1
    %v409 = vsel %vm406, %v407, %v408
    %v410 = vrot.slane %v227, 1
    %v411 = vrot.slane %v231, 1
    %v412 = vsel %vm406, %v410, %v411
    %v413 = vrot.slane %v237, 1
    %v414 = vrot.slane %v241, 1
    %v415 = vsel %vm406, %v413, %v414
    %v416 = vrot.slane %v247, 1
    %v417 = vrot.slane %v251, 1
    %v418 = vsel %vm406, %v416, %v417
    %v419 = vrot.slane %v257, 1
    %v420 = vrot.slane %v261, 1
    %v421 = vsel %vm406, %v419, %v420
    %v422 = vrot.slane %v267, 1
    %v423 = vrot.slane %v271, 1
    %v424 = vsel %vm406, %v422, %v423
    %v425 = vrot.slane %v277, 1
    %v426 = vrot.slane %v281, 1
    %v427 = vsel %vm406, %v425, %v426
    %v428 = vrot.slane %v287, 1
    %v429 = vrot.slane %v291, 1
    %v430 = vsel %vm406, %v428, %v429
    %v447 = vadd.f32 %v215, %v409
    %v448 = vadd.f32 %v219, %v408
    %v449 = vadd.f32 %v225, %v412
    %v450 = vadd.f32 %v229, %v411
    %v451 = vadd.f32 %v235, %v415
    %v452 = vadd.f32 %v239, %v414
    %v453 = vadd.f32 %v245, %v418
    %v454 = vadd.f32 %v249, %v417
    %v455 = vadd.f32 %v255, %v421
    %v456 = vadd.f32 %v259, %v420
    %v457 = vadd.f32 %v265, %v424
    %v458 = vadd.f32 %v269, %v423
    %v459 = vadd.f32 %v275, %v427
    %v460 = vadd.f32 %v279, %v426
    %v461 = vadd.f32 %v285, %v430
    %v462 = vadd.f32 %v289, %v429
    %vm479 = vcmask 1045504
    %v480 = vrot.slane %v328, 2
    %v481 = vrot.slane %v331, 2
    %v482 = vsel %vm479, %v480, %v481
    %v483 = vrot.slane %v336, 2
    %v484 = vrot.slane %v339, 2
    %v485 = vsel %vm479, %v483, %v484
    %v486 = vrot.slane %v344, 2
    %v487 = vrot.slane %v347, 2
    %v488 = vsel %vm479, %v486, %v487
    %v489 = vrot.slane %v352, 2
    %v490 = vrot.slane %v355, 2
    %v491 = vsel %vm479, %v489, %v490
    %v492 = vrot.slane %v360, 2
    %v493 = vrot.slane %v363, 2
    %v494 = vsel %vm479, %v492, %v493
    %v495 = vrot.slane %v368, 2
    %v496 = vrot.slane %v371, 2
    %v497 = vsel %vm479, %v495, %v496
    %v498 = vrot.slane %v376, 2
    %v499 = vrot.slane %v379, 2
    %v500 = vsel %vm479, %v498, %v499
    %v501 = vrot.slane %v384, 2
    %v502 = vrot.slane %v387, 2
    %v503 = vsel %vm479, %v501, %v502
    %v520 = vadd.f32 %v447, %v482
    %v521 = vadd.f32 %v448, %v481
    %v522 = vadd.f32 %v449, %v485
    %v523 = vadd.f32 %v450, %v484
    %v524 = vadd.f32 %v451, %v488
    %v525 = vadd.f32 %v452, %v487
    %v526 = vadd.f32 %v453, %v491
    %v527 = vadd.f32 %v454, %v490
    %v528 = vadd.f32 %v455, %v494
    %v529 = vadd.f32 %v456, %v493
    %v530 = vadd.f32 %v457, %v497
    %v531 = vadd.f32 %v458, %v496
    %v532 = vadd.f32 %v459, %v500
    %v533 = vadd.f32 %v460, %v499
    %v534 = vadd.f32 %v461, %v503
    %v535 = vadd.f32 %v462, %v502
    %v536 = vld [vmem:[%s2] sm:$0x1]
    %v538 = vlaneseq
    %v539 = vshrl.u32 %v538, 7
    %v540 = vsub.s32 0, %v539
    %v541 = vrot.slane %v536, %v540
    %v543 = vadd.f32 %v520, %v541
    %v544 = vadd.f32 %v521, %v541
    %v545 = vadd.f32 %v522, %v541
    %v546 = vadd.f32 %v523, %v541
    %v547 = vadd.f32 %v524, %v541
    %v548 = vadd.f32 %v525, %v541
    %v549 = vadd.f32 %v526, %v541
    %v550 = vadd.f32 %v527, %v541
    %v551 = vadd.f32 %v528, %v541
    %v552 = vadd.f32 %v529, %v541
    %v553 = vadd.f32 %v530, %v541
    %v554 = vadd.f32 %v531, %v541
    %v555 = vadd.f32 %v532, %v541
    %v556 = vadd.f32 %v533, %v541
    %v557 = vadd.f32 %v534, %v541
    %v558 = vadd.f32 %v535, %v541
    %v559 = vmax.f32 %v543, 0.0
    %v560 = vmax.f32 %v544, 0.0
    %v561 = vmax.f32 %v545, 0.0
    %v562 = vmax.f32 %v546, 0.0
    %v563 = vmax.f32 %v547, 0.0
    %v564 = vmax.f32 %v548, 0.0
    %v565 = vmax.f32 %v549, 0.0
    %v566 = vmax.f32 %v550, 0.0
    %v567 = vmax.f32 %v551, 0.0
    %v568 = vmax.f32 %v552, 0.0
    %v569 = vmax.f32 %v553, 0.0
    %v570 = vmax.f32 %v554, 0.0
    %v571 = vmax.f32 %v555, 0.0
    %v572 = vmax.f32 %v556, 0.0
    %v573 = vmax.f32 %v557, 0.0
    %v574 = vmax.f32 %v558, 0.0
    %v575 = vsel %vm479, %v560, -inf
    %v576 = vmax.f32 %v559, %v575
    %v577 = vrot.slane %v576, 4
    %v578 = vmax.f32 %v576, %v577
    %v579 = vrot.slane %v578, 2
    %v580 = vmax.f32 %v578, %v579
    %v581 = vrot.slane %v580, 1
    %v582 = vmax.f32 %v580, %v581
    %v583 = vsel %vm479, %v562, -inf
    %v584 = vmax.f32 %v561, %v583
    %v585 = vrot.slane %v584, 4
    %v586 = vmax.f32 %v584, %v585
    %v587 = vrot.slane %v586, 2
    %v588 = vmax.f32 %v586, %v587
    %v589 = vrot.slane %v588, 1
    %v590 = vmax.f32 %v588, %v589
    %v591 = vsel %vm479, %v564, -inf
    %v592 = vmax.f32 %v563, %v591
    %v593 = vrot.slane %v592, 4
    %v594 = vmax.f32 %v592, %v593
    %v595 = vrot.slane %v594, 2
    %v596 = vmax.f32 %v594, %v595
    %v597 = vrot.slane %v596, 1
    %v598 = vmax.f32 %v596, %v597
    %v599 = vsel %vm479, %v566, -inf
    %v600 = vmax.f32 %v565, %v599
    %v601 = vrot.slane %v600, 4
    %v602 = vmax.f32 %v600, %v601
    %v603 = vrot.slane %v602, 2
    %v604 = vmax.f32 %v602, %v603
    %v605 = vrot.slane %v604, 1
    %v606 = vmax.f32 %v604, %v605
    %v607 = vsel %vm479, %v568, -inf
    %v608 = vmax.f32 %v567, %v607
    %v609 = vrot.slane %v608, 4
    %v610 = vmax.f32 %v608, %v609
    %v611 = vrot.slane %v610, 2
    %v612 = vmax.f32 %v610, %v611
    %v613 = vrot.slane %v612, 1
    %v614 = vmax.f32 %v612, %v613
    %v615 = vsel %vm479, %v570, -inf
    %v616 = vmax.f32 %v569, %v615
    %v617 = vrot.slane %v616, 4
    %v618 = vmax.f32 %v616, %v617
    %v619 = vrot.slane %v618, 2
    %v620 = vmax.f32 %v618, %v619
    %v621 = vrot.slane %v620, 1
    %v622 = vmax.f32 %v620, %v621
    %v623 = vsel %vm479, %v572, -inf
    %v624 = vmax.f32 %v571, %v623
    %v625 = vrot.slane %v624, 4
    %v626 = vmax.f32 %v624, %v625
    %v627 = vrot.slane %v626, 2
    %v628 = vmax.f32 %v626, %v627
    %v629 = vrot.slane %v628, 1
    %v630 = vmax.f32 %v628, %v629
    %v631 = vsel %vm479, %v574, -inf
    %v632 = vmax.f32 %v573, %v631
    %v633 = vrot.slane %v632, 4
    %v634 = vmax.f32 %v632, %v633
    %v635 = vrot.slane %v634, 2
    %v636 = vmax.f32 %v634, %v635
    %v637 = vrot.slane %v636, 1
    %v638 = vmax.f32 %v636, %v637
    %v639 = vld [vmem:[%s3] sm:$0xff]
    %v640 = vld [vmem:[%s3 + $0x8] sm:$0xff]
    %v641 = vld [vmem:[%s3 + $0x10] sm:$0xff]
    %v642 = vld [vmem:[%s3 + $0x18] sm:$0xff]
    %v643 = vld [vmem:[%s3 + $0x20] sm:$0xff]
    %v644 = vld [vmem:[%s3 + $0x28] sm:$0xff]
    %v645 = vld [vmem:[%s3 + $0x30] sm:$0xff]
    %v646 = vld [vmem:[%s3 + $0x38] sm:$0xff]
    %v647 = vld [vmem:[%s3 + $0x40] sm:$0xff]
    %v648 = vld [vmem:[%s3 + $0x48] sm:$0xff]
    %v649 = vld [vmem:[%s3 + $0x50] sm:$0xff]
    %v650 = vld [vmem:[%s3 + $0x58] sm:$0xff]
    %v651 = vld [vmem:[%s3 + $0x60] sm:$0xff]
    %v652 = vld [vmem:[%s3 + $0x68] sm:$0xff]
    %v653 = vld [vmem:[%s3 + $0x70] sm:$0xff]
    %v654 = vld [vmem:[%s3 + $0x78] sm:$0xff]
    %v655 = vld [vmem:[%s4] sm:$0x1]
    %v657 = vlaneseq
    %v658 = vshrl.u32 %v657, 7
    %v659 = vsub.s32 0, %v658
    %v660 = vrot.slane %v655, %v659
    %vm670 = vcmask 1041409
    %v671 = vsel %vm670, %v590, %v582
    %vm672 = vcmask 1042434
    %v673 = vsel %vm672, %v598, %v671
    %vm674 = vcmask 1043459
    %v675 = vsel %vm674, %v606, %v673
    %vm676 = vcmask 1044484
    %v677 = vsel %vm676, %v614, %v675
    %vm678 = vcmask 1045509
    %v679 = vsel %vm678, %v622, %v677
    %vm680 = vcmask 1046534
    %v681 = vsel %vm680, %v630, %v679
    %vm682 = vcmask 1047559
    %v683 = vsel %vm682, %v638, %v681
    %685 = vmatprep.subr.mxu0 0.0
    %686 = vmatpush1.msra.mxu0 %v639
    %687 = vmatprep.subr.mxu0 0.0
    %688 = vmatpush1.msra.mxu0 %v640
    %689 = vmatprep.subr.mxu0 0.0
    %690 = vmatpush1.msra.mxu0 %v641
    %691 = vmatprep.subr.mxu0 0.0
    %692 = vmatpush1.msra.mxu0 %v642
    %693 = vmatprep.subr.mxu0 0.0
    %694 = vmatpush1.msra.mxu0 %v643
    %695 = vmatprep.subr.mxu0 0.0
    %696 = vmatpush1.msra.mxu0 %v644
    %697 = vmatprep.subr.mxu0 0.0
    %698 = vmatpush1.msra.mxu0 %v645
    %699 = vmatprep.subr.mxu0 0.0
    %700 = vmatpush1.msra.mxu0 %v646
    %701 = vmatprep.subr.mxu0 0.0
    %702 = vmatpush1.msra.mxu0 %v647
    %703 = vmatprep.subr.mxu0 0.0
    %704 = vmatpush1.msra.mxu0 %v648
    %705 = vmatprep.subr.mxu0 0.0
    %706 = vmatpush1.msra.mxu0 %v649
    %707 = vmatprep.subr.mxu0 0.0
    %708 = vmatpush1.msra.mxu0 %v650
    %709 = vmatprep.subr.mxu0 0.0
    %710 = vmatpush1.msra.mxu0 %v651
    %711 = vmatprep.subr.mxu0 0.0
    %712 = vmatpush1.msra.mxu0 %v652
    %713 = vmatprep.subr.mxu0 0.0
    %714 = vmatpush1.msra.mxu0 %v653
    %715 = vmatprep.subr.mxu0 0.0
    %716 = vmatpush1.msra.mxu0 %v654
    %717 = vmatprep.subr.mxu0 0.0
    %718 = vmatpush1.msra.mxu0 0.0
    %719 = vmatprep.subr.mxu0 0.0
    %720 = vmatpush1.msra.mxu0 0.0
    %721 = vmatprep.subr.mxu0 0.0
    %722 = vmatpush1.msra.mxu0 0.0
    %723 = vmatprep.subr.mxu0 0.0
    %724 = vmatpush1.msra.mxu0 0.0
    %725 = vmatprep.subr.mxu0 0.0
    %726 = vmatpush1.msra.mxu0 0.0
    %727 = vmatprep.subr.mxu0 0.0
    %728 = vmatpush1.msra.mxu0 0.0
    %729 = vmatprep.subr.mxu0 0.0
    %730 = vmatpush1.msra.mxu0 0.0
    %731 = vmatprep.subr.mxu0 0.0
    %732 = vmatpush1.msra.mxu0 0.0
    %733 = vmatprep.subr.mxu0 0.0
    %734 = vmatpush1.msra.mxu0 0.0
    %735 = vmatprep.subr.mxu0 0.0
    %736 = vmatpush1.msra.mxu0 0.0
    %737 = vmatprep.subr.mxu0 0.0
    %738 = vmatpush1.msra.mxu0 0.0
    %739 = vmatprep.subr.mxu0 0.0
    %740 = vmatpush1.msra.mxu0 0.0
    %741 = vmatprep.subr.mxu0 0.0
    %742 = vmatpush1.msra.mxu0 0.0
    %743 = vmatprep.subr.mxu0 0.0
    %744 = vmatpush1.msra.mxu0 0.0
    %745 = vmatprep.subr.mxu0 0.0
    %746 = vmatpush1.msra.mxu0 0.0
    %747 = vmatprep.subr.mxu0 0.0
    %748 = vmatpush1.msra.mxu0 0.0
    %749 = vmatprep.mubr.f32.mxu0 0.0
    %750 = vmatmul.mubr.f32.gmra.mrb[0].mxu0 %v683
    %v751 = vpop.f32.mrb[0].mxu0
    %v752 = vadd.f32 %v660, %v751
    %v753 = vpop.f32.mrb[0].mxu0
    %754 = vdwg.mxu0
    %v755 = vmax.f32 %v752, 0.0
    %v756 = vld [vmem:[%s5] sm:$0xff]
    %v757 = vld [vmem:[%s5 + $0x8] sm:$0xff]
    %v758 = vld [vmem:[%s5 + $0x10] sm:$0xff]
    %v759 = vld [vmem:[%s5 + $0x18] sm:$0xff]
    %v760 = vld [vmem:[%s5 + $0x20] sm:$0xff]
    %v761 = vld [vmem:[%s5 + $0x28] sm:$0xff]
    %v762 = vld [vmem:[%s5 + $0x30] sm:$0xff]
    %v763 = vld [vmem:[%s5 + $0x38] sm:$0xff]
    %v764 = vld [vmem:[%s5 + $0x40] sm:$0xff]
    %v765 = vld [vmem:[%s5 + $0x48] sm:$0xff]
    %v766 = vld [vmem:[%s5 + $0x50] sm:$0xff]
    %v767 = vld [vmem:[%s5 + $0x58] sm:$0xff]
    %v768 = vld [vmem:[%s5 + $0x60] sm:$0xff]
    %v769 = vld [vmem:[%s5 + $0x68] sm:$0xff]
    %v770 = vld [vmem:[%s5 + $0x70] sm:$0xff]
    %v771 = vld [vmem:[%s5 + $0x78] sm:$0xff]
    %v772 = vld [vmem:[%s6] sm:$0x1]
    %v774 = vlaneseq
    %v775 = vshrl.u32 %v774, 7
    %v776 = vsub.s32 0, %v775
    %v777 = vrot.slane %v772, %v776
    %779 = vmatprep.subr.mxu0 0.0
    %780 = vmatpush1.msra.mxu0 %v756
    %781 = vmatprep.subr.mxu0 0.0
    %782 = vmatpush1.msra.mxu0 %v757
    %783 = vmatprep.subr.mxu0 0.0
    %784 = vmatpush1.msra.mxu0 %v758
    %785 = vmatprep.subr.mxu0 0.0
    %786 = vmatpush1.msra.mxu0 %v759
    %787 = vmatprep.subr.mxu0 0.0
    %788 = vmatpush1.msra.mxu0 %v760
    %789 = vmatprep.subr.mxu0 0.0
    %790 = vmatpush1.msra.mxu0 %v761
    %791 = vmatprep.subr.mxu0 0.0
    %792 = vmatpush1.msra.mxu0 %v762
    %793 = vmatprep.subr.mxu0 0.0
    %794 = vmatpush1.msra.mxu0 %v763
    %795 = vmatprep.subr.mxu0 0.0
    %796 = vmatpush1.msra.mxu0 %v764
    %797 = vmatprep.subr.mxu0 0.0
    %798 = vmatpush1.msra.mxu0 %v765
    %799 = vmatprep.subr.mxu0 0.0
    %800 = vmatpush1.msra.mxu0 %v766
    %801 = vmatprep.subr.mxu0 0.0
    %802 = vmatpush1.msra.mxu0 %v767
    %803 = vmatprep.subr.mxu0 0.0
    %804 = vmatpush1.msra.mxu0 %v768
    %805 = vmatprep.subr.mxu0 0.0
    %806 = vmatpush1.msra.mxu0 %v769
    %807 = vmatprep.subr.mxu0 0.0
    %808 = vmatpush1.msra.mxu0 %v770
    %809 = vmatprep.subr.mxu0 0.0
    %810 = vmatpush1.msra.mxu0 %v771
    %811 = vmatprep.subr.mxu0 0.0
    %812 = vmatpush1.msra.mxu0 0.0
    %813 = vmatprep.subr.mxu0 0.0
    %814 = vmatpush1.msra.mxu0 0.0
    %815 = vmatprep.subr.mxu0 0.0
    %816 = vmatpush1.msra.mxu0 0.0
    %817 = vmatprep.subr.mxu0 0.0
    %818 = vmatpush1.msra.mxu0 0.0
    %819 = vmatprep.subr.mxu0 0.0
    %820 = vmatpush1.msra.mxu0 0.0
    %821 = vmatprep.subr.mxu0 0.0
    %822 = vmatpush1.msra.mxu0 0.0
    %823 = vmatprep.subr.mxu0 0.0
    %824 = vmatpush1.msra.mxu0 0.0
    %825 = vmatprep.subr.mxu0 0.0
    %826 = vmatpush1.msra.mxu0 0.0
    %827 = vmatprep.subr.mxu0 0.0
    %828 = vmatpush1.msra.mxu0 0.0
    %829 = vmatprep.subr.mxu0 0.0
    %830 = vmatpush1.msra.mxu0 0.0
    %831 = vmatprep.subr.mxu0 0.0
    %832 = vmatpush1.msra.mxu0 0.0
    %833 = vmatprep.subr.mxu0 0.0
    %834 = vmatpush1.msra.mxu0 0.0
    %835 = vmatprep.subr.mxu0 0.0
    %836 = vmatpush1.msra.mxu0 0.0
    %837 = vmatprep.subr.mxu0 0.0
    %838 = vmatpush1.msra.mxu0 0.0
    %839 = vmatprep.subr.mxu0 0.0
    %840 = vmatpush1.msra.mxu0 0.0
    %841 = vmatprep.subr.mxu0 0.0
    %842 = vmatpush1.msra.mxu0 0.0
    %843 = vmatprep.mubr.f32.mxu0 0.0
    %844 = vmatmul.mubr.f32.gmra.mrb[0].mxu0 %v755
    %v845 = vpop.f32.mrb[0].mxu0
    %v846 = vadd.f32 %v777, %v845
    %v847 = vpop.f32.mrb[0].mxu0
    %848 = vdwg.mxu0
    %s849 = sld [smem:[#allocation2]]
    %v850 = vstv %s849
    %v851 = vmul.f32 %v846, %v850
    %vm852 = vcmask 15360
    %853 = vst.msk [vmem:[%s8] sm:$0xff] %vm852, %v851
    // Predicated region
    $region42: #{tpu_custom_call.1} parent=1 // pred_check
      _
    $region43: #{tpu_custom_call.1} parent=1 // pred_check_branch
      %855 = sbr.rel (0) target = $region45
    $region44: #{tpu_custom_call.1} parent=1 // pred_region
      _
    $region45: #{tpu_custom_call.1} parent=1 // pred_fallthru
      _
    // Predicated region
    $region46: #{tpu_custom_call.1} parent=1 // pred_check
      _
    $region47: #{tpu_custom_call.1} parent=1 // pred_check_branch
      %857 = sbr.rel (0) target = $region49
    $region48: #{tpu_custom_call.1} parent=1 // pred_region
      _
    $region49: #{tpu_custom_call.1} parent=1 // pred_fallthru
      _
    %858 = vsyncpa [#allocation4], 1
    %859 = vsyncpa [#allocation6], 1

</llo_original>
